<compile_context>
chip_gen: v7x
topology: tpu7x:2x2x1
jax: 0.10.0
libtpu: 0.0.40
codegen_flags: <defaults>
</compile_context>

<pallas_src>
import jax
import jax.numpy as jnp
from jax import lax
from jax.experimental import pallas as pl
from jax.experimental.pallas import tpu as pltpu

BN_EPS = 1e-5


def cbn_kernel(y_ref, x_ref, gtab_ref, btab_ref, o_ref):
    # y_ref    : (B,) int32 in SMEM           -- class index per batch element
    # x_ref    : (B, CBLK, HW) in VMEM        -- current channel block, lane-dense
    # gtab_ref : (num_classes, CBLK) in VMEM  -- gamma half of the embedding table
    # btab_ref : (num_classes, CBLK) in VMEM  -- beta  half of the embedding table
    # o_ref    : (B, CBLK, HW)
    B, CBLK, HW = x_ref.shape

    x = x_ref[...].astype(jnp.float32)

    # ---- per-channel batch statistics over (batch, spatial) -------------------
    mean = jnp.mean(x, axis=(0, 2), keepdims=True)                       # (1, CBLK, 1)
    var = jnp.mean(jnp.square(x - mean), axis=(0, 2), keepdims=True)     # biased var
    inv = lax.rsqrt(var + BN_EPS)                                        # (1, CBLK, 1)

    # ---- conditional affine params: gather embedding rows for each batch elem -
    gamma = jnp.concatenate(
        [gtab_ref[pl.ds(y_ref[b], 1), :] for b in range(B)], axis=0)     # (B, CBLK)
    beta = jnp.concatenate(
        [btab_ref[pl.ds(y_ref[b], 1), :] for b in range(B)], axis=0)     # (B, CBLK)

    # ---- fold BN + conditional affine into a single FMA per element -----------
    scale = gamma[:, :, None] * inv                                      # (B, CBLK, 1)
    shift = beta[:, :, None] - scale * mean                              # (B, CBLK, 1)
    o_ref[...] = (x * scale + shift).astype(o_ref.dtype)


def conditional_batchnorm2d_forward(x_nchw, y, embed_weight, *, c_block=None):
    """x_nchw: (B, C, H, W); y: (B,) int; embed_weight: (num_classes, 2*C).

    Returns (B, C, H, W). Implements training-mode BN (batch statistics)."""
    B, C, H, W = x_nchw.shape
    HW = H * W
    num_classes = embed_weight.shape[0]
    assert embed_weight.shape[1] == 2 * C

    # Free reshape: spatial dims become the dense lane axis. No transposes needed.
    x3 = x_nchw.reshape(B, C, HW)

    # Pre-chunk the embedding table (zero-cost slicing == torch `.chunk(2, 1)`).
    gamma_tab = embed_weight[:, :C]
    beta_tab = embed_weight[:, C:]

    # Channel-block tiling: channels are independent, so the grid axis is parallel.
    if c_block is None:
        c_block = C if C <= 512 else 512
    assert C % c_block == 0
    grid = (C // c_block,)

    out3 = pl.pallas_call(
        cbn_kernel,
        out_shape=jax.ShapeDtypeStruct((B, C, HW), x_nchw.dtype),
        grid_spec=pltpu.PrefetchScalarGridSpec(
            num_scalar_prefetch=0,
            grid=grid,
            in_specs=[
                pl.BlockSpec(memory_space=pltpu.MemorySpace.SMEM),       # y
                pl.BlockSpec((B, c_block, HW), lambda j: (0, j, 0)),     # x
                pl.BlockSpec((num_classes, c_block), lambda j: (0, j)),  # gamma table
                pl.BlockSpec((num_classes, c_block), lambda j: (0, j)),  # beta table
            ],
            out_specs=pl.BlockSpec((B, c_block, HW), lambda j: (0, j, 0)),
        ),
        compiler_params=pltpu.CompilerParams(
            dimension_semantics=("parallel",)),
    )(y.astype(jnp.int32), x3, gamma_tab, beta_tab)

    return out3.reshape(B, C, H, W)


def conditional_batchnorm2d_reference(x, y, embed_weight, eps=BN_EPS):
    """Pure-JAX reference matching the PyTorch forward (training-mode BN)."""
    C = x.shape[1]
    mean = jnp.mean(x, axis=(0, 2, 3), keepdims=True)
    var = jnp.mean(jnp.square(x - mean), axis=(0, 2, 3), keepdims=True)
    xhat = (x - mean) / jnp.sqrt(var + eps)
    gb = embed_weight[y]                                   # (B, 2C) embedding lookup
    gamma = gb[:, :C].reshape(-1, C, 1, 1)
    beta = gb[:, C:].reshape(-1, C, 1, 1)
    return gamma * xhat + beta


if __name__ == "__main__":
    B, C, H, W, num_classes = 2, 4, 16, 16, 10
    key = jax.random.PRNGKey(0)
    kx, ky, kg, kb = jax.random.split(key, 4)

    x = jax.random.normal(kx, (B, C, H, W), jnp.float32)
    y = jax.random.randint(ky, (B,), 0, num_classes, jnp.int32)
    # Embedding weight as after the module's init (gamma ~ N(1, 0.02), beta init 0),
    # with a small perturbation on beta so the beta path is actually exercised.
    gamma_part = 1.0 + 0.02 * jax.random.normal(kg, (num_classes, C), jnp.float32)
    beta_part = 0.05 * jax.random.normal(kb, (num_classes, C), jnp.float32)
    embed_weight = jnp.concatenate([gamma_part, beta_part], axis=1)  # (num_classes, 2C)

    out = conditional_batchnorm2d_forward(x, y, embed_weight)
    out = jax.block_until_ready(out)

    ref = conditional_batchnorm2d_reference(x, y, embed_weight)
    assert out.shape == (B, C, H, W), out.shape
    max_err = float(jnp.max(jnp.abs(out - ref)))
    assert jnp.allclose(out, ref, atol=1e-4, rtol=1e-4), max_err

    print("KERNEL_OK")
</pallas_src>

<mosaic_0001>
module attributes {stable_mosaic.version = 11 : i64} {
  func.func @cbn_kernel(%arg0: i32, %arg1: memref<2xi32, #tpu.memory_space<smem>>, %arg2: memref<2x4x256xf32, #tpu.memory_space<vmem>>, %arg3: memref<10x4xf32, #tpu.memory_space<vmem>>, %arg4: memref<10x4xf32, #tpu.memory_space<vmem>>, %arg5: memref<2x4x256xf32, #tpu.memory_space<vmem>>) attributes {dimension_semantics = [#tpu.dimension_semantics<parallel>], iteration_bounds = array<i64: 1>, scalar_prefetch = 0 : i64, scratch_operands = 0 : i64, tpu.core_type = #tpu.core_type<tc>, window_params = [{transform_indices = @transform_0, window_bounds = array<i64: 2>}, {transform_indices = @transform_1, window_bounds = array<i64: 2, 4, 256>}, {transform_indices = @transform_2, window_bounds = array<i64: 10, 4>}, {transform_indices = @transform_3, window_bounds = array<i64: 10, 4>}, {transform_indices = @transform_4, window_bounds = array<i64: 2, 4, 256>}]} {
    %c0 = arith.constant 0 : index
    %c0_0 = arith.constant 0 : index
    %c0_1 = arith.constant 0 : index
    %0 = vector.load %arg2[%c0, %c0_0, %c0_1] : memref<2x4x256xf32, #tpu.memory_space<vmem>>, vector<2x4x256xf32>
    %cst = arith.constant dense<0.000000e+00> : vector<4xf32>
    %1 = vector.multi_reduction <add>, %0, %cst [0, 2] : vector<2x4x256xf32> to vector<4xf32>
    %2 = vector.shape_cast %1 : vector<4xf32> to vector<1x4x1xf32>
    %cst_2 = arith.constant 5.120000e+02 : f32
    %3 = vector.broadcast %cst_2 : f32 to vector<1x4x1xf32>
    %4 = arith.divf %2, %3 : vector<1x4x1xf32>
    %5 = vector.broadcast %4 : vector<1x4x1xf32> to vector<2x4x256xf32>
    %6 = arith.subf %0, %5 : vector<2x4x256xf32>
    %7 = arith.mulf %6, %6 : vector<2x4x256xf32>
    %cst_3 = arith.constant dense<0.000000e+00> : vector<4xf32>
    %8 = vector.multi_reduction <add>, %7, %cst_3 [0, 2] : vector<2x4x256xf32> to vector<4xf32>
    %9 = vector.shape_cast %8 : vector<4xf32> to vector<1x4x1xf32>
    %cst_4 = arith.constant 5.120000e+02 : f32
    %10 = vector.broadcast %cst_4 : f32 to vector<1x4x1xf32>
    %11 = arith.divf %9, %10 : vector<1x4x1xf32>
    %cst_5 = arith.constant 9.99999974E-6 : f32
    %12 = vector.broadcast %cst_5 : f32 to vector<1x4x1xf32>
    %13 = arith.addf %11, %12 : vector<1x4x1xf32>
    %14 = math.rsqrt %13 : vector<1x4x1xf32>
    %c0_6 = arith.constant 0 : index
    %15 = memref.load %arg1[%c0_6] : memref<2xi32, #tpu.memory_space<smem>>
    %16 = arith.index_cast %15 : i32 to index
    %c0_7 = arith.constant 0 : index
    %17 = vector.load %arg3[%16, %c0_7] : memref<10x4xf32, #tpu.memory_space<vmem>>, vector<1x4xf32>
    %c1 = arith.constant 1 : index
    %18 = memref.load %arg1[%c1] : memref<2xi32, #tpu.memory_space<smem>>
    %19 = arith.index_cast %18 : i32 to index
    %c0_8 = arith.constant 0 : index
    %20 = vector.load %arg3[%19, %c0_8] : memref<10x4xf32, #tpu.memory_space<vmem>>, vector<1x4xf32>
    %21 = tpu.concatenate %17, %20 in 0 : vector<1x4xf32>, vector<1x4xf32> -> vector<2x4xf32>
    %c0_9 = arith.constant 0 : index
    %22 = memref.load %arg1[%c0_9] : memref<2xi32, #tpu.memory_space<smem>>
    %23 = arith.index_cast %22 : i32 to index
    %c0_10 = arith.constant 0 : index
    %24 = vector.load %arg4[%23, %c0_10] : memref<10x4xf32, #tpu.memory_space<vmem>>, vector<1x4xf32>
    %c1_11 = arith.constant 1 : index
    %25 = memref.load %arg1[%c1_11] : memref<2xi32, #tpu.memory_space<smem>>
    %26 = arith.index_cast %25 : i32 to index
    %c0_12 = arith.constant 0 : index
    %27 = vector.load %arg4[%26, %c0_12] : memref<10x4xf32, #tpu.memory_space<vmem>>, vector<1x4xf32>
    %28 = tpu.concatenate %24, %27 in 0 : vector<1x4xf32>, vector<1x4xf32> -> vector<2x4xf32>
    %29 = vector.shape_cast %21 : vector<2x4xf32> to vector<2x4x1xf32>
    %30 = vector.broadcast %14 : vector<1x4x1xf32> to vector<2x4x1xf32>
    %31 = arith.mulf %29, %30 : vector<2x4x1xf32>
    %32 = vector.shape_cast %28 : vector<2x4xf32> to vector<2x4x1xf32>
    %33 = vector.broadcast %4 : vector<1x4x1xf32> to vector<2x4x1xf32>
    %34 = arith.mulf %31, %33 : vector<2x4x1xf32>
    %35 = arith.subf %32, %34 : vector<2x4x1xf32>
    %36 = vector.broadcast %31 : vector<2x4x1xf32> to vector<2x4x256xf32>
    %37 = arith.mulf %0, %36 : vector<2x4x256xf32>
    %38 = vector.broadcast %35 : vector<2x4x1xf32> to vector<2x4x256xf32>
    %39 = arith.addf %37, %38 : vector<2x4x256xf32>
    %c0_13 = arith.constant 0 : index
    %c0_14 = arith.constant 0 : index
    %c0_15 = arith.constant 0 : index
    %40 = vector.load %arg5[%c0_13, %c0_14, %c0_15] : memref<2x4x256xf32, #tpu.memory_space<vmem>>, vector<2x4x256xf32>
    tpu.vector_store %arg5[%c0_13, %c0_14, %c0_15], %39 {strides = array<i32>} : memref<2x4x256xf32, #tpu.memory_space<vmem>>, vector<2x4x256xf32>,
    return
  }
  func.func @transform_0(%arg0: i32) -> i32 {
    %c0_i32 = arith.constant 0 : i32
    %c0_i32_0 = arith.constant 0 : i32
    return %c0_i32 : i32
  }
  func.func @transform_1(%arg0: i32) -> (i32, i32, i32) {
    %c0_i32 = arith.constant 0 : i32
    %c0_i32_0 = arith.constant 0 : i32
    %c0_i32_1 = arith.constant 0 : i32
    return %c0_i32, %arg0, %c0_i32_0 : i32, i32, i32
  }
  func.func @transform_2(%arg0: i32) -> (i32, i32) {
    %c0_i32 = arith.constant 0 : i32
    %c0_i32_0 = arith.constant 0 : i32
    return %c0_i32, %arg0 : i32, i32
  }
  func.func @transform_3(%arg0: i32) -> (i32, i32) {
    %c0_i32 = arith.constant 0 : i32
    %c0_i32_0 = arith.constant 0 : i32
    return %c0_i32, %arg0 : i32, i32
  }
  func.func @transform_4(%arg0: i32) -> (i32, i32, i32) {
    %c0_i32 = arith.constant 0 : i32
    %c0_i32_0 = arith.constant 0 : i32
    %c0_i32_1 = arith.constant 0 : i32
    return %c0_i32, %arg0, %c0_i32_0 : i32, i32, i32
  }
}

</mosaic_0001>

<llo_original>
// kernel: tpu_custom_call.1
$region0: #{tpu_custom_call.1}
  #allocation0 [shape = 'u32[]', space=smem, size = 0x4, offset = 0x4, fixed_abs, tag = 'smem constant byte address 0x4 - core index']
  #allocation1 [shape = 'u32[144,128]{1,0:T(1,128)}', space=vmem, size = 0x12000, scoped, tag = 'internal scratch']
  %s0 = inlined_call_operand.vmem [shape: s32[2], index: 0, kind: input, shape index: {}]
  %s1 = inlined_call_operand.vmem [shape: f32[2,4,256], index: 1, kind: input, shape index: {}]
  %s2 = inlined_call_operand.vmem [shape: f32[10,4], index: 2, kind: input, shape index: {}]
  %s3 = inlined_call_operand.vmem [shape: f32[10,4], index: 3, kind: input, shape index: {}]
  %s4 = inlined_call_operand.hbm [shape: f32[2,4,256], index: 4, kind: output, shape index: {}]
  %s5 = sld [smem:[#allocation0]]
  $region30: #{tpu_custom_call.1} parent=0
    _
  %s7 = ssub.s32 1, %s5
  %s8 = scalar_select 0, %s7, %s5
  $region1: #{tpu_custom_call.1} parent=0
    #allocation2 [shape = 'u8[512]{0}', space=smem, size = 0x200, scoped, tag = 'input window, operand 0, single buffered']
    #allocation3 [shape = 's32[1]{0}', space=sflag, size = 0x4, scoped, tag = 'scoped memory for tpu_custom_call.1']
    #allocation4 [shape = 's32[1]{0}', space=sflag, size = 0x4, scoped, tag = 'scoped memory for tpu_custom_call.1']
    #allocation5 [shape = 'u8[8192]{0}', space=vmem, size = 0x2000, scoped, tag = 'output window, operand 0, single buffered']
    %9 = vsyncpa [#allocation4], 0
    %10 = vsyncpa [#allocation3], 0
    // Predicated region
    $region2: #{tpu_custom_call.1} parent=1 // pred_check
      _
    $region3: #{tpu_custom_call.1} parent=1 // pred_check_branch
      %12 = sbr.rel (0) target = $region5
    $region4: #{tpu_custom_call.1} parent=1 // pred_region
      %s14 = ssub.s32 16, 16
      %15 = vsyncadd [#allocation4], %s14
      %s17 = sshll.u32 %s0, 4
      %s18 = int_to_ptr.vmem [resolvable:$true] %s17
      %20 = dma.vmem_to_smem %s18, 16, [#allocation2], [#allocation4]
    $region5: #{tpu_custom_call.1} parent=1 // pred_fallthru
      _
    // Predicated region
    $region6: #{tpu_custom_call.1} parent=1 // pred_check
      _
    $region7: #{tpu_custom_call.1} parent=1 // pred_check_branch
      %22 = sbr.rel (0) target = $region9
    $region8: #{tpu_custom_call.1} parent=1 // pred_region
      _
    $region9: #{tpu_custom_call.1} parent=1 // pred_fallthru
      _
    // Predicated region
    $region10: #{tpu_custom_call.1} parent=1 // pred_check
      _
    $region11: #{tpu_custom_call.1} parent=1 // pred_check_branch
      %24 = sbr.rel (0) target = $region13
    $region12: #{tpu_custom_call.1} parent=1 // pred_region
      _
    $region13: #{tpu_custom_call.1} parent=1 // pred_fallthru
      _
    // Predicated region
    $region14: #{tpu_custom_call.1} parent=1 // pred_check
      _
    $region15: #{tpu_custom_call.1} parent=1 // pred_check_branch
      %26 = sbr.rel (0) target = $region17
    $region16: #{tpu_custom_call.1} parent=1 // pred_region
      _
    $region17: #{tpu_custom_call.1} parent=1 // pred_fallthru
      _
    // Predicated region
    $region18: #{tpu_custom_call.1} parent=1 // pred_check
      _
    $region19: #{tpu_custom_call.1} parent=1 // pred_check_branch
      %28 = sbr.rel (0) target = $region21
    $region20: #{tpu_custom_call.1} parent=1 // pred_region
      %29 = dma.done [#allocation4], 16
    $region21: #{tpu_custom_call.1} parent=1 // pred_fallthru
      _
    %30 = sfence
    %v31 = vld [vmem:[%s1] sm:$0xff]
    %v32 = vld [vmem:[%s1 + $0x8] sm:$0xff]
    %v35 = vcombine.high %v31, %v31
    %v36 = vcombine.high %v32, %v32
    %vm39 = vcmask 1043456
    %v40 = vsel %vm39, %v31, 0.0
    %v41 = vsel %vm39, %v35, 0.0
    %v42 = vadd.f32 %v40, %v41
    %v43 = vsel %vm39, %v32, 0.0
    %v44 = vadd.f32 %v42, %v43
    %v45 = vsel %vm39, %v36, 0.0
    %v46 = vadd.f32 %v44, %v45
    %47 = vadd.xlane.f32.xlu0 %v46
    %v48 = vpop.xlane.xlu0 %47
    %v49 = vrcp.pop 512.0
    %v50 = vmul.f32 %v48, %v49
    %v53 = vunpack.c.l.s4 839922192
    %v54 = vunpack.c.0.s8 %v53
    %v55 = vlaneseq
    %v56 = vshrl.u32 %v55, 7
    %v57 = vsub.s32 %v54, %v56
    %v58 = vrot.slane %v50, %v57
    %v60 = vsub.f32 %v31, %v58
    %v61 = vsub.f32 %v32, %v58
    %v62 = vmul.f32 %v60, %v60
    %v63 = vmul.f32 %v61, %v61
    %v66 = vcombine.high %v62, %v62
    %v67 = vcombine.high %v63, %v63
    %v70 = vsel %vm39, %v62, 0.0
    %v71 = vsel %vm39, %v66, 0.0
    %v72 = vadd.f32 %v70, %v71
    %v73 = vsel %vm39, %v63, 0.0
    %v74 = vadd.f32 %v72, %v73
    %v75 = vsel %vm39, %v67, 0.0
    %v76 = vadd.f32 %v74, %v75
    %77 = vadd.xlane.f32.xlu0 %v76
    %v78 = vpop.xlane.xlu0 %77
    %v79 = vmul.f32 %v78, %v49
    %v80 = vadd.f32 %v79, 1e-05
    %v81 = vrsqrt.pop %v80
    %s82 = sld [smem:[#allocation2]]
    %s83 = scalar_lea.vmem %s2, %s82
    %v84 = vld [vmem:[%s83] sm:$0x1]
    %s85 = sld [smem:[#allocation2 + $0x1]]
    %s86 = scalar_lea.vmem %s2, %s85
    %v87 = vld [vmem:[%s86] sm:$0x1]
    %v89 = vrot.slane %v87, 7
    %vm91 = vcmask 1040384
    %v92 = vsel %vm91, %v84, %v89
    %s93 = scalar_lea.vmem %s3, %s82
    %v94 = vld [vmem:[%s93] sm:$0x1]
    %s95 = scalar_lea.vmem %s3, %s85
    %v96 = vld [vmem:[%s95] sm:$0x1]
    %v98 = vrot.slane %v96, 7
    %v100 = vsel %vm91, %v94, %v98
    %v101 = vlaneseq
    %v102 = vshrl.u32 %v101, 7
    %v103 = vsub.s32 0, %v102
    %v104 = vrot.slane %v92, %v103
    %106 = vbcast.lane.b32.xlu0 %v104, 256
    %v107 = vpop.permute.xlu0 %106
    %v108 = vlaneseq
    %v109 = vshrl.u32 %v108, 7
    %v110 = vsub.s32 1, %v109
    %v111 = vrot.slane %v92, %v110
    %113 = vbcast.lane.b32.xlu0 %v111, 256
    %v114 = vpop.permute.xlu0 %113
    %v115 = vmul.f32 %v107, %v81
    %v116 = vmul.f32 %v114, %v81
    %v117 = vlaneseq
    %v118 = vshrl.u32 %v117, 7
    %v119 = vsub.s32 0, %v118
    %v120 = vrot.slane %v100, %v119
    %122 = vbcast.lane.b32.xlu0 %v120, 256
    %v123 = vpop.permute.xlu0 %122
    %v124 = vlaneseq
    %v125 = vshrl.u32 %v124, 7
    %v126 = vsub.s32 1, %v125
    %v127 = vrot.slane %v100, %v126
    %129 = vbcast.lane.b32.xlu0 %v127, 256
    %v130 = vpop.permute.xlu0 %129
    %v131 = vmul.f32 %v115, %v50
    %v132 = vmul.f32 %v116, %v50
    %v133 = vsub.f32 %v123, %v131
    %v134 = vsub.f32 %v130, %v132
    %v138 = vunpack.c.l.s4 839922192
    %v139 = vunpack.c.0.s8 %v138
    %v140 = vlaneseq
    %v141 = vshrl.u32 %v140, 7
    %v142 = vsub.s32 %v139, %v141
    %v143 = vrot.slane %v115, %v142
    %v145 = vunpack.c.l.s4 839922192
    %v146 = vunpack.c.0.s8 %v145
    %v147 = vlaneseq
    %v148 = vshrl.u32 %v147, 7
    %v149 = vsub.s32 %v146, %v148
    %v150 = vrot.slane %v116, %v149
    %v153 = vmul.f32 %v31, %v143
    %v154 = vmul.f32 %v32, %v150
    %v158 = vunpack.c.l.s4 839922192
    %v159 = vunpack.c.0.s8 %v158
    %v160 = vlaneseq
    %v161 = vshrl.u32 %v160, 7
    %v162 = vsub.s32 %v159, %v161
    %v163 = vrot.slane %v133, %v162
    %v165 = vunpack.c.l.s4 839922192
    %v166 = vunpack.c.0.s8 %v165
    %v167 = vlaneseq
    %v168 = vshrl.u32 %v167, 7
    %v169 = vsub.s32 %v166, %v168
    %v170 = vrot.slane %v134, %v169
    %v173 = vadd.f32 %v153, %v163
    %v174 = vadd.f32 %v154, %v170
    %175 = vst [vmem:[#allocation5] sm:$0xff] %v173
    %176 = vst [vmem:[#allocation5 + $0x8] sm:$0xff] %v174
    // Predicated region
    $region22: #{tpu_custom_call.1} parent=1 // pred_check
      _
    $region23: #{tpu_custom_call.1} parent=1 // pred_check_branch
      %178 = sbr.rel (0) target = $region25
    $region24: #{tpu_custom_call.1} parent=1 // pred_region
      %s180 = ssub.s32 256, 256
      %181 = vsyncadd [#allocation3], %s180
      %s182 = sshll.u32 [#allocation5], 4
      %s183 = int_to_ptr.vmem [resolvable:$true] %s182
      %188 = dma.vmem_to_hbm [thread:$0]  %s183, 256, %s4, [#allocation3], 128, 128, 8
    $region25: #{tpu_custom_call.1} parent=1 // pred_fallthru
      _
    // Predicated region
    $region26: #{tpu_custom_call.1} parent=1 // pred_check
      _
    $region27: #{tpu_custom_call.1} parent=1 // pred_check_branch
      %190 = sbr.rel (0) target = $region29
    $region28: #{tpu_custom_call.1} parent=1 // pred_region
      %191 = dma.done [#allocation3], 256
    $region29: #{tpu_custom_call.1} parent=1 // pred_fallthru
      _
    %192 = vsyncpa [#allocation3], 1
    %193 = vsyncpa [#allocation4], 1

</llo_original>
